<compile_context>
chip_gen: v7x
topology: tpu7x:2x2x1
jax: 0.10.0
libtpu: 0.0.40
codegen_flags: <defaults>
</compile_context>

<pallas_src>
import jax
import jax.numpy as jnp
import numpy as np
from jax.experimental import pallas as pl
from jax.experimental.pallas import tpu as pltpu  # noqa: F401  (TPU backend)

# ----------------- small config consistent with Decoder.__init__ -------------
B = 2            # batch size
S = 8            # number of encoder positions
E_ENC = 16       # encoder_out_dim
EMB = 32         # decoder_params['embedding_dim']
HID = 32         # decoder_params['decoder_hidden']
L = 2            # decoder_params['num_layers']
V = 16           # decoder_params['output_projection']
PREF_IN = 8      # mlp_param['pref_input_dim']  (== mid_embedding_dim)
MLP_HID = 16     # mlp_param['hidden_dim']
MID = PREF_IN
LANES = 128


# ------------------------- packed operand-slab layout -------------------------
def _round8(n):
    return ((n + 7) // 8) * 8


def _build_slab_layout():
    """Row layout of the single packed (R, 128) f32 operand slab."""
    layout = {}
    row = 0

    def add(name, nrows, ncols):
        nonlocal row
        layout[name] = (row, nrows, ncols)
        row += _round8(max(nrows, 1))

    # LSTM weights pre-transposed; x-part and h-part kept separate so the
    # kernel does two accumulating dots instead of a lane-concat of [x | h].
    add('w0x', EMB, 4 * HID)        # W_ih[0].T
    add('w0h', HID, 4 * HID)        # W_hh[0].T
    add('w1x', HID, 4 * HID)        # W_ih[1].T
    add('w1h', HID, 4 * HID)        # W_hh[1].T
    add('b0', 1, 4 * HID)           # b_ih[0] + b_hh[0]
    add('b1', 1, 4 * HID)           # b_ih[1] + b_hh[1]
    add('wch', HID, HID)            # Wc (hidden half), transposed
    add('wcc', E_ENC, HID)          # Wc (context half), transposed
    add('wout', HID, V)             # output projection, transposed
    add('emb', V, EMB)              # embedding table
    add('kqt', HID, B * S)          # (att_key @ Wq_pref) flattened & transposed
    add('valf', B * S, E_ENC)       # att_value flattened to (B*S, E)
    return layout, row


SLAB_LAYOUT, SLAB_ROWS = _build_slab_layout()


def _place(slab, name, mat):
    r0, nr, nc = SLAB_LAYOUT[name]
    mat = jnp.asarray(mat, jnp.float32).reshape(nr, nc)
    return slab.at[r0:r0 + nr, 0:nc].set(mat)


def _read(slab_ref, name):
    r0, nr, nc = SLAB_LAYOUT[name]
    return slab_ref[r0:r0 + nr, 0:nc]


# --------------------------- fused multi-step kernel --------------------------
def _make_decoder_kernel(T):
    """One kernel: T decode steps (embed + 2-layer LSTM + attention + proj)."""

    def kernel(onehot_ref, hc_ref, slab_ref, steps_ref, hc_out_ref):
        # ----- hoist every step-invariant operand out of the decode loop -----
        w0x = _read(slab_ref, 'w0x'); w0h = _read(slab_ref, 'w0h')
        w1x = _read(slab_ref, 'w1x'); w1h = _read(slab_ref, 'w1h')
        b0 = _read(slab_ref, 'b0');   b1 = _read(slab_ref, 'b1')
        wch = _read(slab_ref, 'wch'); wcc = _read(slab_ref, 'wcc')
        wout = _read(slab_ref, 'wout'); emb = _read(slab_ref, 'emb')
        kqt = _read(slab_ref, 'kqt'); valf = _read(slab_ref, 'valf')
        layers = ((w0x, w0h, b0), (w1x, w1h, b1))

        # block-diagonal attention mask: lane j belongs to batch j // S
        col_b = jax.lax.broadcasted_iota(jnp.int32, (B, B * S), 1) // S
        row_b = jax.lax.broadcasted_iota(jnp.int32, (B, B * S), 0)
        att_mask = col_b == row_b

        def step(t, carry):
            hs = list(carry[:L])
            cs = list(carry[L:])

            # in-kernel embedding lookup as a one-hot matmul (table in VMEM)
            oh = onehot_ref[t]                                        # (B, V)
            x = jnp.dot(oh, emb, preferred_element_type=jnp.float32)  # (B, EMB)

            new_hs, new_cs = [], []
            for l in range(L):
                wx, wh, b = layers[l]
                gates = (jnp.dot(x, wx, preferred_element_type=jnp.float32)
                         + jnp.dot(hs[l], wh, preferred_element_type=jnp.float32)
                         + b)                                         # (B, 4H)
                sig = jax.nn.sigmoid(gates)                           # full-width
                tnh = jnp.tanh(gates)                                 # full-width
                i_g = sig[:, 0:HID]
                f_g = sig[:, HID:2 * HID]
                g_g = tnh[:, 2 * HID:3 * HID]
                o_g = sig[:, 3 * HID:4 * HID]
                c_new = f_g * cs[l] + i_g * g_g
                h_new = o_g * jnp.tanh(c_new)
                new_hs.append(h_new)
                new_cs.append(c_new)
                x = h_new                                             # next layer

            hout = x                                                  # (B, H)

            # Luong attention.  Wq is pre-folded into the keys (kqt), and both
            # batches are handled by one masked (B, B*S) score matrix instead
            # of batched M=1 einsums.
            score = jnp.dot(hout, kqt, preferred_element_type=jnp.float32)
            score = jnp.where(att_mask, score, -1e30)
            m = jnp.max(score, axis=-1, keepdims=True)
            e = jnp.where(att_mask, jnp.exp(score - m), 0.0)
            denom = jnp.sum(e, axis=-1, keepdims=True)
            align = e * pl.reciprocal(denom, approx=False)            # exact, EUP
            att_ctx = jnp.dot(align, valf,
                              preferred_element_type=jnp.float32)     # (B, E)
            att_h = jnp.tanh(
                jnp.dot(att_ctx, wcc, preferred_element_type=jnp.float32)
                + jnp.dot(hout, wch, preferred_element_type=jnp.float32))
            logits = jnp.dot(att_h, wout,
                             preferred_element_type=jnp.float32)      # (B, V)

            # lane-contiguous per-step output slab: [logits | att_h]
            steps_ref[t] = jnp.concatenate([logits, att_h], axis=-1)
            return tuple(new_hs) + tuple(new_cs)

        init = tuple(hc_ref[l] for l in range(L)) + tuple(hc_ref[L + l] for l in range(L))
        final = jax.lax.fori_loop(0, T, step, init, unroll=(T <= 4))

        for l in range(L):
            hc_out_ref[l] = final[l]
            hc_out_ref[L + l] = final[L + l]

    return kernel


def decode_sequence(slab, tokens, h, c):
    """Run T teacher-forced decode steps in ONE fused pallas_call.

    tokens: (T, B) int32.  Returns per-step logits (T,B,V), att_h (T,B,H),
    and final h, c (each (L,B,H)).
    """
    T = tokens.shape[0]
    onehot = jax.nn.one_hot(tokens, V, dtype=jnp.float32)    # (T, B, V)
    hc_in = jnp.concatenate([h, c], axis=0)                  # (2L, B, H)
    steps, hc_out = pl.pallas_call(
        _make_decoder_kernel(T),
        out_shape=(jax.ShapeDtypeStruct((T, B, V + HID), jnp.float32),
                   jax.ShapeDtypeStruct((2 * L, B, HID), jnp.float32)),
    )(onehot, hc_in, slab)
    logits = steps[..., :V]
    att_h = steps[..., V:]
    return logits, att_h, hc_out[:L], hc_out[L:]


# --------------------- one-shot key / value kernel ----------------------------
def _kv_kernel(enc_ref, wkq_ref, wvt_ref, keyq_ref, val_ref):
    enc = enc_ref[...]                                       # (B*S, E)
    keyq_ref[...] = jnp.dot(enc, wkq_ref[...], preferred_element_type=jnp.float32)
    val_ref[...] = jnp.dot(enc, wvt_ref[...], preferred_element_type=jnp.float32)


def compute_key_value(enc, w_kq, wv_t):
    Bn, Sn, E = enc.shape
    Hd = w_kq.shape[1]
    enc2 = enc.reshape(Bn * Sn, E)          # fold batch*seq into sublanes
    keyq2, val2 = pl.pallas_call(
        _kv_kernel,
        out_shape=(jax.ShapeDtypeStruct((Bn * Sn, Hd), jnp.float32),
                   jax.ShapeDtypeStruct((Bn * Sn, E), jnp.float32)),
    )(enc2, w_kq, wv_t)
    return keyq2.reshape(Bn, Sn, Hd), val2.reshape(Bn, Sn, E)


# ------------------------------- parameters -----------------------------------
def init_params(key):
    ks = jax.random.split(key, 20)

    def w(k, shape, scale=0.1):
        return (scale * jax.random.normal(k, shape)).astype(jnp.float32)

    p = {'embedding': w(ks[0], (V, EMB)),
         'w_ih': [], 'w_hh': [], 'b_ih': [], 'b_hh': []}
    for l in range(L):
        in_dim = EMB if l == 0 else HID
        p['w_ih'].append(w(ks[1 + l], (4 * HID, in_dim)))
        p['w_hh'].append(w(ks[3 + l], (4 * HID, HID)))
        p['b_ih'].append(w(ks[5 + l], (4 * HID,)))
        p['b_hh'].append(w(ks[7 + l], (4 * HID,)))
    p['mlp_w1'] = w(ks[9], (MLP_HID, PREF_IN));  p['mlp_b1'] = w(ks[10], (MLP_HID,))
    p['mlp_w2'] = w(ks[11], (MLP_HID, MLP_HID)); p['mlp_b2'] = w(ks[12], (MLP_HID,))
    p['mlp_w3'] = w(ks[13], (3 * MID, MLP_HID)); p['mlp_b3'] = w(ks[14], (3 * MID,))
    p['Wq_w'] = w(ks[15], (HID * HID, MID))
    p['Wk_w'] = w(ks[16], (E_ENC * HID, MID))
    p['Wv_w'] = w(ks[17], (E_ENC * E_ENC, MID))
    p['Wc_w'] = w(ks[18], (HID, E_ENC + HID))
    p['Wout_w'] = w(ks[19], (V, HID))
    return p


def prepare_params(params):
    """Pre-transpose / pre-combine all static weights into ONE packed slab."""
    slab = jnp.zeros((SLAB_ROWS, LANES), jnp.float32)
    slab = _place(slab, 'w0x', params['w_ih'][0].T)
    slab = _place(slab, 'w0h', params['w_hh'][0].T)
    slab = _place(slab, 'w1x', params['w_ih'][1].T)
    slab = _place(slab, 'w1h', params['w_hh'][1].T)
    slab = _place(slab, 'b0', (params['b_ih'][0] + params['b_hh'][0])[None, :])
    slab = _place(slab, 'b1', (params['b_ih'][1] + params['b_hh'][1])[None, :])
    slab = _place(slab, 'wch', params['Wc_w'][:, E_ENC:].T)
    slab = _place(slab, 'wcc', params['Wc_w'][:, :E_ENC].T)
    slab = _place(slab, 'wout', params['Wout_w'].T)
    slab = _place(slab, 'emb', params['embedding'])
    return {'weight_slab': slab}


# ------------------------------- decoder API -----------------------------------
def initial_decoder(params, prep, enc_outputs, pref):
    # mlp(pref): 3 stacked Linear layers, no activation (matches the module)
    mid = params['mlp_w1'] @ pref + params['mlp_b1']
    mid = params['mlp_w2'] @ mid + params['mlp_b2']
    mid = params['mlp_w3'] @ mid + params['mlp_b3']                   # [3*MID]
    Wq_pref = (params['Wq_w'] @ mid[:MID]).reshape(HID, HID)
    Wk_pref = (params['Wk_w'] @ mid[MID:2 * MID]).reshape(HID, E_ENC)
    Wv_pref = (params['Wv_w'] @ mid[2 * MID:3 * MID]).reshape(E_ENC, E_ENC)

    # Fold Wq into the keys once per episode:
    #   score = (h Wq^T) · key  ==  h · (key @ Wq)   =>   key_q = enc @ (Wk^T Wq)
    w_kq = Wk_pref.T @ Wq_pref                                        # (E, H)
    key_q, att_value = compute_key_value(enc_outputs, w_kq, Wv_pref.T)

    slab = _place(prep['weight_slab'], 'kqt', key_q.reshape(B * S, HID).T)
    slab = _place(slab, 'valf', att_value.reshape(B * S, E_ENC))

    start_token = jnp.zeros((B, 1), dtype=jnp.int32)
    h = jnp.zeros((L, B, HID), dtype=jnp.float32)
    c = jnp.zeros((L, B, HID), dtype=jnp.float32)
    state = [start_token, h, c]
    ctx = {'slab': slab, 'Wq_pref': Wq_pref, 'Wk_pref': Wk_pref,
           'Wv_pref': Wv_pref, 'key_q': key_q, 'att_value': att_value}
    return state, ctx


@jax.jit
def decoder_forward(slab, state):
    """Single decode step == the PyTorch Decoder.forward (T=1 of the kernel)."""
    tokens, h, c = state                                      # tokens (B,1) int32
    logits, att_h, h_new, c_new = decode_sequence(slab, tokens.T, h, c)
    logits = jnp.swapaxes(logits, 0, 1)                       # (B, 1, V)
    att_h = jnp.swapaxes(att_h, 0, 1)                         # (B, 1, H)
    # mirrors PyTorch: return rnn_output, state = [attention_h, h, c]
    return logits, [att_h, h_new, c_new]


decode_sequence_jit = jax.jit(decode_sequence)


# ------------------------------ pure-JAX reference ------------------------------
def reference_step(params, Wq_pref, att_key, att_value, token, h, c):
    """Exactly mirrors the PyTorch forward for one step."""
    x = params['embedding'][token[:, 0]]                      # (B, EMB)
    hs, cs = [], []
    for l in range(L):
        gates = (x @ params['w_ih'][l].T + h[l] @ params['w_hh'][l].T
                 + params['b_ih'][l] + params['b_hh'][l])
        i, f, g, o = jnp.split(gates, 4, axis=1)
        i = jax.nn.sigmoid(i); f = jax.nn.sigmoid(f)
        g = jnp.tanh(g); o = jax.nn.sigmoid(o)
        cn = f * c[l] + i * g
        hn = o * jnp.tanh(cn)
        hs.append(hn); cs.append(cn)
        x = hn
    output = x[:, None, :]                                    # (B, 1, H)
    att_q = output @ Wq_pref.T
    score = jnp.einsum('bqh,bth->bqt', att_q, att_key)
    align = jax.nn.softmax(score, axis=2)
    att_ctx = jnp.einsum('bqt,bte->bqe', align, att_value)
    att_h = jnp.tanh(jnp.concatenate([att_ctx, output], axis=2) @ params['Wc_w'].T)
    logits = att_h @ params['Wout_w'].T
    return logits, att_h, jnp.stack(hs), jnp.stack(cs)


# ------------------------------------ main --------------------------------------
if __name__ == "__main__":
    key = jax.random.PRNGKey(0)
    k_p, k_enc, k_pref, k_tok = jax.random.split(key, 4)
    params = init_params(k_p)
    prep = prepare_params(params)
    enc_outputs = jax.random.normal(k_enc, (B, S, E_ENC), dtype=jnp.float32)
    pref = jax.random.uniform(k_pref, (PREF_IN,), dtype=jnp.float32)

    state, ctx = initial_decoder(params, prep, enc_outputs, pref)

    # plain-JAX attention context for the reference
    att_key_ref = jnp.einsum('bse,he->bsh', enc_outputs, ctx['Wk_pref'])
    att_val_ref = jnp.einsum('bse,fe->bsf', enc_outputs, ctx['Wv_pref'])

    # --- verify the one-shot key/value kernel ---
    np.testing.assert_allclose(np.asarray(ctx['key_q']),
                               np.asarray(att_key_ref @ ctx['Wq_pref']),
                               rtol=2e-3, atol=2e-3)
    np.testing.assert_allclose(np.asarray(ctx['att_value']),
                               np.asarray(att_val_ref), rtol=2e-3, atol=2e-3)

    # --- single decode step (== PyTorch Decoder.forward) ---
    logits, new_state = decoder_forward(ctx['slab'], state)
    att_h, h_new, c_new = new_state
    jax.block_until_ready((logits, att_h, h_new, c_new))

    ref_logits, ref_atth, ref_h, ref_c = reference_step(
        params, ctx['Wq_pref'], att_key_ref, att_val_ref,
        state[0], state[1], state[2])
    np.testing.assert_allclose(np.asarray(logits), np.asarray(ref_logits),
                               rtol=2e-3, atol=2e-3)
    np.testing.assert_allclose(np.asarray(att_h), np.asarray(ref_atth),
                               rtol=2e-3, atol=2e-3)
    np.testing.assert_allclose(np.asarray(h_new), np.asarray(ref_h),
                               rtol=2e-3, atol=2e-3)
    np.testing.assert_allclose(np.asarray(c_new), np.asarray(ref_c),
                               rtol=2e-3, atol=2e-3)

    # --- multi-step fused decode: T teacher-forced steps in ONE pallas_call ---
    T = 6
    tokens = jax.random.randint(k_tok, (T, B), 0, V, dtype=jnp.int32)
    lg_all, ah_all, h_T, c_T = decode_sequence_jit(ctx['slab'], tokens,
                                                   state[1], state[2])
    jax.block_until_ready((lg_all, ah_all, h_T, c_T))

    h_r, c_r = state[1], state[2]
    ref_lg, ref_ah = [], []
    for t in range(T):
        lg, ah, h_r, c_r = reference_step(
            params, ctx['Wq_pref'], att_key_ref, att_val_ref,
            tokens[t][:, None], h_r, c_r)
        ref_lg.append(lg[:, 0, :]); ref_ah.append(ah[:, 0, :])
    ref_lg = jnp.stack(ref_lg); ref_ah = jnp.stack(ref_ah)
    np.testing.assert_allclose(np.asarray(lg_all), np.asarray(ref_lg),
                               rtol=2e-3, atol=2e-3)
    np.testing.assert_allclose(np.asarray(ah_all), np.asarray(ref_ah),
                               rtol=2e-3, atol=2e-3)
    np.testing.assert_allclose(np.asarray(h_T), np.asarray(h_r),
                               rtol=2e-3, atol=2e-3)
    np.testing.assert_allclose(np.asarray(c_T), np.asarray(c_r),
                               rtol=2e-3, atol=2e-3)

    print("KERNEL_OK")
</pallas_src>

<mosaic_0001>
module attributes {stable_mosaic.version = 11 : i64} {
  func.func @_kv_kernel(%arg0: memref<16x16xf32, #tpu.memory_space<vmem>>, %arg1: memref<16x32xf32, #tpu.memory_space<vmem>>, %arg2: memref<16x16xf32, #tpu.memory_space<vmem>>, %arg3: memref<16x32xf32, #tpu.memory_space<vmem>>, %arg4: memref<16x16xf32, #tpu.memory_space<vmem>>) attributes {dimension_semantics = [], scalar_prefetch = 0 : i64, scratch_operands = 0 : i64, tpu.core_type = #tpu.core_type<tc>} {
    %c0 = arith.constant 0 : index
    %c0_0 = arith.constant 0 : index
    %0 = vector.load %arg0[%c0, %c0_0] : memref<16x16xf32, #tpu.memory_space<vmem>>, vector<16x16xf32>
    %c0_1 = arith.constant 0 : index
    %c0_2 = arith.constant 0 : index
    %1 = vector.load %arg1[%c0_1, %c0_2] : memref<16x32xf32, #tpu.memory_space<vmem>>, vector<16x32xf32>
    %cst = arith.constant dense<0.000000e+00> : vector<16x32xf32>
    %2 = tpu.matmul %0, %1, %cst {dimension_numbers = #tpu.dot_dimension_numbers<[1], [0], [0], [1], [0, 0, 1, 1], [], []>} : vector<16x16xf32>, vector<16x32xf32>, vector<16x32xf32> -> vector<16x32xf32>
    %c0_3 = arith.constant 0 : index
    %c0_4 = arith.constant 0 : index
    %3 = vector.load %arg3[%c0_3, %c0_4] : memref<16x32xf32, #tpu.memory_space<vmem>>, vector<16x32xf32>
    tpu.vector_store %arg3[%c0_3, %c0_4], %2 {strides = array<i32>} : memref<16x32xf32, #tpu.memory_space<vmem>>, vector<16x32xf32>,
    %c0_5 = arith.constant 0 : index
    %c0_6 = arith.constant 0 : index
    %4 = vector.load %arg2[%c0_5, %c0_6] : memref<16x16xf32, #tpu.memory_space<vmem>>, vector<16x16xf32>
    %cst_7 = arith.constant dense<0.000000e+00> : vector<16x16xf32>
    %5 = tpu.matmul %0, %4, %cst_7 {dimension_numbers = #tpu.dot_dimension_numbers<[1], [0], [0], [1], [0, 0, 1, 1], [], []>} : vector<16x16xf32>, vector<16x16xf32>, vector<16x16xf32> -> vector<16x16xf32>
    %c0_8 = arith.constant 0 : index
    %c0_9 = arith.constant 0 : index
    %6 = vector.load %arg4[%c0_8, %c0_9] : memref<16x16xf32, #tpu.memory_space<vmem>>, vector<16x16xf32>
    tpu.vector_store %arg4[%c0_8, %c0_9], %5 {strides = array<i32>} : memref<16x16xf32, #tpu.memory_space<vmem>>, vector<16x16xf32>,
    return
  }
}

</mosaic_0001>

<llo_original>
// kernel: tpu_custom_call.1
$region0: #{tpu_custom_call.1}
  #allocation0 [shape = 'u32[]', space=smem, size = 0x4, offset = 0x4, fixed_abs, tag = 'smem constant byte address 0x4 - core index']
  #allocation1 [shape = 'u32[144,128]{1,0:T(1,128)}', space=vmem, size = 0x12000, scoped, tag = 'internal scratch']
  %s0 = inlined_call_operand.hbm [shape: f32[16,16], index: 0, kind: input, shape index: {}]
  %s1 = inlined_call_operand.hbm [shape: f32[16,32], index: 1, kind: input, shape index: {}]
  %s2 = inlined_call_operand.hbm [shape: f32[16,16], index: 2, kind: input, shape index: {}]
  %s3 = inlined_call_operand.hbm [shape: f32[16,32], index: 3, kind: output, shape index: {0}]
  %s4 = inlined_call_operand.hbm [shape: f32[16,16], index: 4, kind: output, shape index: {1}]
  %5 = xla_tuple %s3, %s4
  %s6 = sld [smem:[#allocation0]]
  $region42: #{tpu_custom_call.1} parent=0
    _
  %s8 = ssub.s32 1, %s6
  %s9 = scalar_select 0, %s8, %s6
  $region1: #{tpu_custom_call.1} parent=0
    #allocation2 [shape = 'u8[8192]{0}', space=vmem, size = 0x2000, scoped, tag = 'input window, operand 0, single buffered']
    #allocation3 [shape = 's32[1]{0}', space=sflag, size = 0x4, scoped, tag = 'scoped memory for tpu_custom_call.1']
    #allocation4 [shape = 's32[1]{0}', space=sflag, size = 0x4, scoped, tag = 'scoped memory for tpu_custom_call.1']
    #allocation5 [shape = 'u8[8192]{0}', space=vmem, size = 0x2000, scoped, tag = 'input window, operand 1, single buffered']
    #allocation6 [shape = 's32[1]{0}', space=sflag, size = 0x4, scoped, tag = 'scoped memory for tpu_custom_call.1']
    #allocation7 [shape = 'u8[8192]{0}', space=vmem, size = 0x2000, scoped, tag = 'input window, operand 2, single buffered']
    #allocation8 [shape = 'u8[8192]{0}', space=vmem, size = 0x2000, scoped, tag = 'output window, operand 0, single buffered']
    #allocation9 [shape = 'u8[8192]{0}', space=vmem, size = 0x2000, scoped, tag = 'output window, operand 1, single buffered']
    #allocation10 [shape = 's32[1]{0}', space=sflag, size = 0x4, scoped, tag = 'scoped memory for tpu_custom_call.1']
    %10 = vsyncpa [#allocation3], 0
    %11 = vsyncpa [#allocation6], 0
    %12 = vsyncpa [#allocation4], 0
    %13 = vsyncpa [#allocation10], 0
    // Predicated region
    $region2: #{tpu_custom_call.1} parent=1 // pred_check
      _
    $region3: #{tpu_custom_call.1} parent=1 // pred_check_branch
      %15 = sbr.rel (0) target = $region5
    $region4: #{tpu_custom_call.1} parent=1 // pred_region
      %s17 = ssub.s32 256, 256
      %18 = vsyncadd [#allocation3], %s17
      %s19 = sshll.u32 [#allocation2], 4
      %s20 = int_to_ptr.vmem [resolvable:$true] %s19
      %25 = dma.hbm_to_vmem [thread:$0]  %s0, 256, %s20, [#allocation3], 128, 128, 8
    $region5: #{tpu_custom_call.1} parent=1 // pred_fallthru
      _
    // Predicated region
    $region6: #{tpu_custom_call.1} parent=1 // pred_check
      _
    $region7: #{tpu_custom_call.1} parent=1 // pred_check_branch
      %27 = sbr.rel (0) target = $region9
    $region8: #{tpu_custom_call.1} parent=1 // pred_region
      %s29 = ssub.s32 256, 256
      %30 = vsyncadd [#allocation6], %s29
      %s31 = sshll.u32 [#allocation5], 4
      %s32 = int_to_ptr.vmem [resolvable:$true] %s31
      %37 = dma.hbm_to_vmem [thread:$0]  %s1, 256, %s32, [#allocation6], 128, 128, 8
    $region9: #{tpu_custom_call.1} parent=1 // pred_fallthru
      _
    // Predicated region
    $region10: #{tpu_custom_call.1} parent=1 // pred_check
      _
    $region11: #{tpu_custom_call.1} parent=1 // pred_check_branch
      %39 = sbr.rel (0) target = $region13
    $region12: #{tpu_custom_call.1} parent=1 // pred_region
      %s41 = ssub.s32 256, 256
      %42 = vsyncadd [#allocation6], %s41
      %s43 = sshll.u32 [#allocation7], 4
      %s44 = int_to_ptr.vmem [resolvable:$true] %s43
      %49 = dma.hbm_to_vmem [thread:$0]  %s2, 256, %s44, [#allocation6], 128, 128, 8
    $region13: #{tpu_custom_call.1} parent=1 // pred_fallthru
      _
    // Predicated region
    $region14: #{tpu_custom_call.1} parent=1 // pred_check
      _
    $region15: #{tpu_custom_call.1} parent=1 // pred_check_branch
      %51 = sbr.rel (0) target = $region17
    $region16: #{tpu_custom_call.1} parent=1 // pred_region
      %52 = dma.done [#allocation3], 256
    $region17: #{tpu_custom_call.1} parent=1 // pred_fallthru
      _
    // Predicated region
    $region18: #{tpu_custom_call.1} parent=1 // pred_check
      _
    $region19: #{tpu_custom_call.1} parent=1 // pred_check_branch
      %54 = sbr.rel (0) target = $region21
    $region20: #{tpu_custom_call.1} parent=1 // pred_region
      %55 = dma.done [#allocation6], 256
    $region21: #{tpu_custom_call.1} parent=1 // pred_fallthru
      _
    // Predicated region
    $region22: #{tpu_custom_call.1} parent=1 // pred_check
      _
    $region23: #{tpu_custom_call.1} parent=1 // pred_check_branch
      %57 = sbr.rel (0) target = $region25
    $region24: #{tpu_custom_call.1} parent=1 // pred_region
      %58 = dma.done [#allocation6], 256
    $region25: #{tpu_custom_call.1} parent=1 // pred_fallthru
      _
    %v59 = vld [vmem:[#allocation2] sm:$0xff]
    %v60 = vld [vmem:[#allocation2 + $0x8] sm:$0xff]
    %v61 = vld [vmem:[#allocation5] sm:$0xff]
    %v62 = vld [vmem:[#allocation5 + $0x8] sm:$0xff]
    %vm63 = vcmask 130048
    %v65 = vsel %vm63, %v59, 0
    %v68 = vsel %vm63, %v60, 0
    %70 = vmatprep.subr.mxu0 0.0
    %71 = vmatpush1.msra.mxu0 %v61
    %72 = vmatprep.subr.mxu0 0.0
    %73 = vmatpush1.msra.mxu0 %v62
    %74 = vmatprep.subr.mxu0 0.0
    %75 = vmatpush1.msra.mxu0 0.0
    %76 = vmatprep.subr.mxu0 0.0
    %77 = vmatpush1.msra.mxu0 0.0
    %78 = vmatprep.subr.mxu0 0.0
    %79 = vmatpush1.msra.mxu0 0.0
    %80 = vmatprep.subr.mxu0 0.0
    %81 = vmatpush1.msra.mxu0 0.0
    %82 = vmatprep.subr.mxu0 0.0
    %83 = vmatpush1.msra.mxu0 0.0
    %84 = vmatprep.subr.mxu0 0.0
    %85 = vmatpush1.msra.mxu0 0.0
    %86 = vmatprep.subr.mxu0 0.0
    %87 = vmatpush1.msra.mxu0 0.0
    %88 = vmatprep.subr.mxu0 0.0
    %89 = vmatpush1.msra.mxu0 0.0
    %90 = vmatprep.subr.mxu0 0.0
    %91 = vmatpush1.msra.mxu0 0.0
    %92 = vmatprep.subr.mxu0 0.0
    %93 = vmatpush1.msra.mxu0 0.0
    %94 = vmatprep.subr.mxu0 0.0
    %95 = vmatpush1.msra.mxu0 0.0
    %96 = vmatprep.subr.mxu0 0.0
    %97 = vmatpush1.msra.mxu0 0.0
    %98 = vmatprep.subr.mxu0 0.0
    %99 = vmatpush1.msra.mxu0 0.0
    %100 = vmatprep.subr.mxu0 0.0
    %101 = vmatpush1.msra.mxu0 0.0
    %102 = vmatprep.subr.mxu0 0.0
    %103 = vmatpush1.msra.mxu0 0.0
    %104 = vmatprep.subr.mxu0 0.0
    %105 = vmatpush1.msra.mxu0 0.0
    %106 = vmatprep.subr.mxu0 0.0
    %107 = vmatpush1.msra.mxu0 0.0
    %108 = vmatprep.subr.mxu0 0.0
    %109 = vmatpush1.msra.mxu0 0.0
    %110 = vmatprep.subr.mxu0 0.0
    %111 = vmatpush1.msra.mxu0 0.0
    %112 = vmatprep.subr.mxu0 0.0
    %113 = vmatpush1.msra.mxu0 0.0
    %114 = vmatprep.subr.mxu0 0.0
    %115 = vmatpush1.msra.mxu0 0.0
    %116 = vmatprep.subr.mxu0 0.0
    %117 = vmatpush1.msra.mxu0 0.0
    %118 = vmatprep.subr.mxu0 0.0
    %119 = vmatpush1.msra.mxu0 0.0
    %120 = vmatprep.subr.mxu0 0.0
    %121 = vmatpush1.msra.mxu0 0.0
    %122 = vmatprep.subr.mxu0 0.0
    %123 = vmatpush1.msra.mxu0 0.0
    %124 = vmatprep.subr.mxu0 0.0
    %125 = vmatpush1.msra.mxu0 0.0
    %126 = vmatprep.subr.mxu0 0.0
    %127 = vmatpush1.msra.mxu0 0.0
    %128 = vmatprep.subr.mxu0 0.0
    %129 = vmatpush1.msra.mxu0 0.0
    %130 = vmatprep.subr.mxu0 0.0
    %131 = vmatpush1.msra.mxu0 0.0
    %132 = vmatprep.subr.mxu0 0.0
    %133 = vmatpush1.msra.mxu0 0.0
    %134 = vmatprep.mubr.f32.mxu0 0.0
    %135 = vmatmul.mubr.f32.gmra.mrb[0].mxu0 %v65
    %v136 = vpop.f32.mrb[0].mxu0
    %v137 = vadd.f32 0.0, %v136
    %v138 = vpop.f32.mrb[0].mxu0
    %139 = vmatprep.mubr.f32.mxu0 0.0
    %140 = vmatmul.mubr.f32.gmra.mrb[0].mxu0 %v68
    %v141 = vpop.f32.mrb[0].mxu0
    %v142 = vadd.f32 0.0, %v141
    %v143 = vpop.f32.mrb[0].mxu0
    %144 = vdwg.mxu0
    %vm145 = vcmask 261120
    %146 = vst.msk [vmem:[#allocation8] sm:$0xff] %vm145, %v137
    %147 = vst.msk [vmem:[#allocation8 + $0x8] sm:$0xff] %vm145, %v142
    %v148 = vld [vmem:[#allocation7] sm:$0xff]
    %v149 = vld [vmem:[#allocation7 + $0x8] sm:$0xff]
    %150 = vmatprep.subr.mxu0 0.0
    %151 = vmatpush1.msra.mxu0 %v148
    %152 = vmatprep.subr.mxu0 0.0
    %153 = vmatpush1.msra.mxu0 %v149
    %154 = vmatprep.subr.mxu0 0.0
    %155 = vmatpush1.msra.mxu0 0.0
    %156 = vmatprep.subr.mxu0 0.0
    %157 = vmatpush1.msra.mxu0 0.0
    %158 = vmatprep.subr.mxu0 0.0
    %159 = vmatpush1.msra.mxu0 0.0
    %160 = vmatprep.subr.mxu0 0.0
    %161 = vmatpush1.msra.mxu0 0.0
    %162 = vmatprep.subr.mxu0 0.0
    %163 = vmatpush1.msra.mxu0 0.0
    %164 = vmatprep.subr.mxu0 0.0
    %165 = vmatpush1.msra.mxu0 0.0
    %166 = vmatprep.subr.mxu0 0.0
    %167 = vmatpush1.msra.mxu0 0.0
    %168 = vmatprep.subr.mxu0 0.0
    %169 = vmatpush1.msra.mxu0 0.0
    %170 = vmatprep.subr.mxu0 0.0
    %171 = vmatpush1.msra.mxu0 0.0
    %172 = vmatprep.subr.mxu0 0.0
    %173 = vmatpush1.msra.mxu0 0.0
    %174 = vmatprep.subr.mxu0 0.0
    %175 = vmatpush1.msra.mxu0 0.0
    %176 = vmatprep.subr.mxu0 0.0
    %177 = vmatpush1.msra.mxu0 0.0
    %178 = vmatprep.subr.mxu0 0.0
    %179 = vmatpush1.msra.mxu0 0.0
    %180 = vmatprep.subr.mxu0 0.0
    %181 = vmatpush1.msra.mxu0 0.0
    %182 = vmatprep.subr.mxu0 0.0
    %183 = vmatpush1.msra.mxu0 0.0
    %184 = vmatprep.subr.mxu0 0.0
    %185 = vmatpush1.msra.mxu0 0.0
    %186 = vmatprep.subr.mxu0 0.0
    %187 = vmatpush1.msra.mxu0 0.0
    %188 = vmatprep.subr.mxu0 0.0
    %189 = vmatpush1.msra.mxu0 0.0
    %190 = vmatprep.subr.mxu0 0.0
    %191 = vmatpush1.msra.mxu0 0.0
    %192 = vmatprep.subr.mxu0 0.0
    %193 = vmatpush1.msra.mxu0 0.0
    %194 = vmatprep.subr.mxu0 0.0
    %195 = vmatpush1.msra.mxu0 0.0
    %196 = vmatprep.subr.mxu0 0.0
    %197 = vmatpush1.msra.mxu0 0.0
    %198 = vmatprep.subr.mxu0 0.0
    %199 = vmatpush1.msra.mxu0 0.0
    %200 = vmatprep.subr.mxu0 0.0
    %201 = vmatpush1.msra.mxu0 0.0
    %202 = vmatprep.subr.mxu0 0.0
    %203 = vmatpush1.msra.mxu0 0.0
    %204 = vmatprep.subr.mxu0 0.0
    %205 = vmatpush1.msra.mxu0 0.0
    %206 = vmatprep.subr.mxu0 0.0
    %207 = vmatpush1.msra.mxu0 0.0
    %208 = vmatprep.subr.mxu0 0.0
    %209 = vmatpush1.msra.mxu0 0.0
    %210 = vmatprep.subr.mxu0 0.0
    %211 = vmatpush1.msra.mxu0 0.0
    %212 = vmatprep.subr.mxu0 0.0
    %213 = vmatpush1.msra.mxu0 0.0
    %214 = vmatprep.mubr.f32.mxu0 0.0
    %215 = vmatmul.mubr.f32.gmra.mrb[0].mxu0 %v65
    %v216 = vpop.f32.mrb[0].mxu0
    %v217 = vadd.f32 0.0, %v216
    %v218 = vpop.f32.mrb[0].mxu0
    %219 = vmatprep.mubr.f32.mxu0 0.0
    %220 = vmatmul.mubr.f32.gmra.mrb[0].mxu0 %v68
    %v221 = vpop.f32.mrb[0].mxu0
    %v222 = vadd.f32 0.0, %v221
    %v223 = vpop.f32.mrb[0].mxu0
    %224 = vdwg.mxu0
    %225 = vst.msk [vmem:[#allocation9] sm:$0xff] %vm63, %v217
    %226 = vst.msk [vmem:[#allocation9 + $0x8] sm:$0xff] %vm63, %v222
    // Predicated region
    $region26: #{tpu_custom_call.1} parent=1 // pred_check
      _
    $region27: #{tpu_custom_call.1} parent=1 // pred_check_branch
      %228 = sbr.rel (0) target = $region29
    $region28: #{tpu_custom_call.1} parent=1 // pred_region
      %s230 = ssub.s32 256, 256
      %231 = vsyncadd [#allocation4], %s230
      %s232 = sshll.u32 [#allocation8], 4
      %s233 = int_to_ptr.vmem [resolvable:$true] %s232
      %238 = dma.vmem_to_hbm [thread:$0]  %s233, 256, %s3, [#allocation4], 128, 128, 8
    $region29: #{tpu_custom_call.1} parent=1 // pred_fallthru
      _
    // Predicated region
    $region30: #{tpu_custom_call.1} parent=1 // pred_check
      _
    $region31: #{tpu_custom_call.1} parent=1 // pred_check_branch
      %240 = sbr.rel (0) target = $region33
    $region32: #{tpu_custom_call.1} parent=1 // pred_region
      %s242 = ssub.s32 256, 256
      %243 = vsyncadd [#allocation10], %s242
      %s244 = sshll.u32 [#allocation9], 4
      %s245 = int_to_ptr.vmem [resolvable:$true] %s244
      %250 = dma.vmem_to_hbm [thread:$0]  %s245, 256, %s4, [#allocation10], 128, 128, 8
    $region33: #{tpu_custom_call.1} parent=1 // pred_fallthru
      _
    // Predicated region
    $region34: #{tpu_custom_call.1} parent=1 // pred_check
      _
    $region35: #{tpu_custom_call.1} parent=1 // pred_check_branch
      %252 = sbr.rel (0) target = $region37
    $region36: #{tpu_custom_call.1} parent=1 // pred_region
      %253 = dma.done [#allocation4], 256
    $region37: #{tpu_custom_call.1} parent=1 // pred_fallthru
      _
    // Predicated region
    $region38: #{tpu_custom_call.1} parent=1 // pred_check
      _
    $region39: #{tpu_custom_call.1} parent=1 // pred_check_branch
      %255 = sbr.rel (0) target = $region41
    $region40: #{tpu_custom_call.1} parent=1 // pred_region
      %256 = dma.done [#allocation10], 256
    $region41: #{tpu_custom_call.1} parent=1 // pred_fallthru
      _
    %257 = vsyncpa [#allocation3], 1
    %258 = vsyncpa [#allocation6], 1
    %259 = vsyncpa [#allocation4], 1
    %260 = vsyncpa [#allocation10], 1

</llo_original>
